<compile_context>
chip_gen: v6e
topology: v6e:2x2x1
jax: 0.10.0
libtpu: 0.0.40
codegen_flags: <defaults>
</compile_context>

<pallas_src>
import jax
import jax.numpy as jnp
from jax.experimental import pallas as pl
from jax.experimental.pallas import tpu as pltpu


# ----------------------------------------------------------------------------
# Pallas kernel: identity copy of the current block.
# ----------------------------------------------------------------------------
def _copy_kernel(u_ref, o_ref):
    o_ref[...] = u_ref[...]


def _pallas_identity_copy(u, max_block_rows=2048):
    """Materialized identity copy of `u` via a Pallas TPU kernel."""
    n = u.size
    itemsize = jnp.dtype(u.dtype).itemsize
    cost = pl.CostEstimate(flops=0, transcendentals=0, bytes_accessed=2 * n * itemsize)

    LANE = 128
    # Sublane multiple per dtype packing: 8 (f32), 16 (bf16), 32 (int8).
    sub_mult = max(8, 32 // itemsize)

    if n % LANE == 0 and (n // LANE) % sub_mult == 0:
        # ---- Lane-dense tiled path: flatten to (rows, 128), tile the rows. ----
        rows = n // LANE
        cap = max(sub_mult, min(rows, max_block_rows))
        block_rows = (cap // sub_mult) * sub_mult
        while block_rows > sub_mult and rows % block_rows != 0:
            block_rows -= sub_mult
        if rows % block_rows != 0:
            block_rows = rows  # full-extent block is always legal

        u2 = u.reshape(rows, LANE)
        out = pl.pallas_call(
            _copy_kernel,
            out_shape=jax.ShapeDtypeStruct((rows, LANE), u.dtype),
            grid=(rows // block_rows,),
            in_specs=[pl.BlockSpec((block_rows, LANE), lambda i: (i, 0))],
            out_specs=pl.BlockSpec((block_rows, LANE), lambda i: (i, 0)),
            input_output_aliases={0: 0},
            cost_estimate=cost,
            compiler_params=pltpu.CompilerParams(
                dimension_semantics=("parallel",),  # lets v7x shard across 2 TCs
            ),
        )(u2)
        return out.reshape(u.shape)

    # ---- Fallback (small / irregular u): single full-array block. ----
    # A full-extent block sidesteps the (8,128) divisibility rule.
    return pl.pallas_call(
        _copy_kernel,
        out_shape=jax.ShapeDtypeStruct(u.shape, u.dtype),
        grid=(1,),
        in_specs=[pl.BlockSpec(u.shape, lambda i: (0,) * u.ndim)],
        out_specs=pl.BlockSpec(u.shape, lambda i: (0,) * u.ndim),
        input_output_aliases={0: 0},
        cost_estimate=cost,
        compiler_params=pltpu.CompilerParams(
            dimension_semantics=("arbitrary",),
        ),
    )(u)


def global_model_forward(x, edge_index, edge_attr, u, batch, params=None,
                         materialize_copy=True):
    """Reproduces GlobalModel.forward exactly: returns u.

    `materialize_copy=False` is the zero-cost production path (just return the
    input array). The default True path routes through the optimized Pallas
    identity-copy kernel so the kernel is actually exercised.
    `params` are intentionally unused — the PyTorch forward never touches them.
    """
    del x, edge_index, edge_attr, batch, params  # unused in forward, by design
    if not materialize_copy:
        return u
    return _pallas_identity_copy(u)


# ----------------------------------------------------------------------------
# Deterministic parameter construction matching GlobalModel.__init__ shapes.
# (Dead code on the forward path — kept only for structural fidelity.)
# ----------------------------------------------------------------------------
def init_global_model_params(in_features, out_features, key):
    node_f, _edge_f, u_f = in_features
    d_in = u_f + node_f  # in_features[2] + in_features[0]
    k1, k2 = jax.random.split(key)
    return {
        "lin1_w": jax.random.normal(k1, (out_features, d_in), jnp.float32) * 0.02,
        "bn1_gamma": jnp.ones((out_features,), jnp.float32),
        "bn1_beta": jnp.zeros((out_features,), jnp.float32),
        "lin2_w": jax.random.normal(k2, (out_features, out_features), jnp.float32) * 0.02,
        "bn2_gamma": jnp.ones((out_features,), jnp.float32),
        "bn2_beta": jnp.zeros((out_features,), jnp.float32),
    }


if __name__ == "__main__":
    key = jax.random.PRNGKey(0)
    k_x, k_e, k_u, k_u2, k_p = jax.random.split(key, 5)

    # Small graph-like shapes.
    num_nodes = 8
    num_edges = 12
    num_graphs = 2
    in_features = (4, 6, 8)   # (node_feat, edge_feat, global_feat)
    out_features = 16

    x = jax.random.normal(k_x, (num_nodes, in_features[0]), jnp.float32)
    edge_index = jnp.zeros((2, num_edges), jnp.int32)
    edge_attr = jax.random.normal(k_e, (num_edges, in_features[1]), jnp.float32)
    u = jax.random.normal(k_u, (num_graphs, in_features[2]), jnp.float32)
    batch = jnp.concatenate(
        [jnp.zeros((num_nodes // 2,), jnp.int32), jnp.ones((num_nodes // 2,), jnp.int32)]
    )
    params = init_global_model_params(in_features, out_features, k_p)

    # 1) Module-shaped input (small, irregular) -> fallback full-block path.
    out = global_model_forward(x, edge_index, edge_attr, u, batch, params)
    out = jax.block_until_ready(out)
    assert out.shape == u.shape and out.dtype == u.dtype
    assert bool(jnp.all(out == u))

    # 2) Lane-dense tiled path (rows x 128, multi-step grid) on a slightly
    #    larger u, forcing several grid steps with a tiny block cap.
    u_big = jax.random.normal(k_u2, (32, 128), jnp.float32)
    out_big = _pallas_identity_copy(u_big, max_block_rows=8)   # grid = (4,)
    out_big = jax.block_until_ready(out_big)
    assert out_big.shape == u_big.shape and out_big.dtype == u_big.dtype
    assert bool(jnp.all(out_big == u_big))

    # 3) Zero-cost pass-through path (the true production optimum).
    out_fast = global_model_forward(x, edge_index, edge_attr, u, batch, params,
                                    materialize_copy=False)
    assert out_fast is u

    print("KERNEL_OK")
</pallas_src>

<mosaic_0001>
module attributes {stable_mosaic.version = 11 : i64} {
  func.func @_copy_kernel(%arg0: i32, %arg1: memref<2x8xf32, #tpu.memory_space<vmem>>, %arg2: memref<2x8xf32, #tpu.memory_space<vmem>>) attributes {dimension_semantics = [#tpu.dimension_semantics<arbitrary>], iteration_bounds = array<i64: 1>, scalar_prefetch = 0 : i64, scratch_operands = 0 : i64, tpu.core_type = #tpu.core_type<tc>, window_params = [{pipeline_mode = #tpu.pipeline_mode<synchronous>, transform_indices = @transform_0, window_bounds = array<i64: 2, 8>}, {pipeline_mode = #tpu.pipeline_mode<synchronous>, transform_indices = @transform_1, window_bounds = array<i64: 2, 8>}]} {
    %c0 = arith.constant 0 : index
    %c0_0 = arith.constant 0 : index
    %0 = vector.load %arg1[%c0, %c0_0] : memref<2x8xf32, #tpu.memory_space<vmem>>, vector<2x8xf32>
    %c0_1 = arith.constant 0 : index
    %c0_2 = arith.constant 0 : index
    %1 = vector.load %arg2[%c0_1, %c0_2] : memref<2x8xf32, #tpu.memory_space<vmem>>, vector<2x8xf32>
    tpu.vector_store %arg2[%c0_1, %c0_2], %0 {strides = array<i32>} : memref<2x8xf32, #tpu.memory_space<vmem>>, vector<2x8xf32>,
    return
  }
  func.func @transform_0(%arg0: i32) -> (i32, i32) {
    %c0_i32 = arith.constant 0 : i32
    %c0_i32_0 = arith.constant 0 : i32
    %c0_i32_1 = arith.constant 0 : i32
    return %c0_i32, %c0_i32_0 : i32, i32
  }
  func.func @transform_1(%arg0: i32) -> (i32, i32) {
    %c0_i32 = arith.constant 0 : i32
    %c0_i32_0 = arith.constant 0 : i32
    %c0_i32_1 = arith.constant 0 : i32
    return %c0_i32, %c0_i32_0 : i32, i32
  }
}

</mosaic_0001>

<llo_original>
// kernel: tpu_custom_call.1
$region0: #{tpu_custom_call.1}
  #allocation0 [shape = 'u32[]', space=smem, size = 0x4, offset = 0x4, fixed_abs, tag = 'smem constant byte address 0x4 - core index']
  #allocation1 [shape = 'u32[144,128]{1,0:T(1,128)}', space=vmem, size = 0x12000, scoped, tag = 'internal scratch']
  %s0 = inlined_call_operand.hbm [shape: f32[2,8], index: 0, kind: input, shape index: {}, may-alias: {0,1}]
  %s1 = inlined_call_operand.hbm [shape: f32[2,8], index: 1, kind: output, shape index: {}, may-alias: {0,1}]
  %s2 = sld [smem:[#allocation0]]
  $region18: #{tpu_custom_call.1} parent=0
    _
  %s4 = ssub.s32 1, %s2
  %s5 = scalar_select 0, %s4, %s2
  $region1: #{tpu_custom_call.1} parent=0
    #allocation2 [shape = 'u8[1024]{0}', space=vmem, size = 0x400, scoped, tag = 'input window, operand 0, single buffered']
    #allocation3 [shape = 's32[1]{0}', space=sflag, size = 0x4, scoped, tag = 'scoped memory for tpu_custom_call.1']
    #allocation4 [shape = 's32[1]{0}', space=sflag, size = 0x4, scoped, tag = 'scoped memory for tpu_custom_call.1']
    #allocation5 [shape = 'u8[1024]{0}', space=vmem, size = 0x400, scoped, tag = 'output window, operand 0, single buffered']
    %6 = vsyncpa [#allocation3], 0
    %7 = vsyncpa [#allocation4], 0
    // Predicated region
    $region2: #{tpu_custom_call.1} parent=1 // pred_check
      _
    $region3: #{tpu_custom_call.1} parent=1 // pred_check_branch
      %9 = sbr.rel (0) target = $region5
    $region4: #{tpu_custom_call.1} parent=1 // pred_region
      %s11 = ssub.s32 32, 32
      %12 = vsyncadd [#allocation3], %s11
      %s14 = sshll.u32 [#allocation2], 4
      %s15 = int_to_ptr.vmem [resolvable:$true] %s14
      %17 = dma.hbm_to_vmem [thread:$0]  %s0, 32, %s15, [#allocation3]
    $region5: #{tpu_custom_call.1} parent=1 // pred_fallthru
      _
    // Predicated region
    $region6: #{tpu_custom_call.1} parent=1 // pred_check
      _
    $region7: #{tpu_custom_call.1} parent=1 // pred_check_branch
      %19 = sbr.rel (0) target = $region9
    $region8: #{tpu_custom_call.1} parent=1 // pred_region
      %20 = dma.done [#allocation3], 32
    $region9: #{tpu_custom_call.1} parent=1 // pred_fallthru
      _
    %v21 = vld [vmem:[#allocation2] sm:$0x3]
    %vm22 = vcmask 58368
    %23 = vst.msk [vmem:[#allocation5] sm:$0x3] %vm22, %v21
    // Predicated region
    $region10: #{tpu_custom_call.1} parent=1 // pred_check
      _
    $region11: #{tpu_custom_call.1} parent=1 // pred_check_branch
      %25 = sbr.rel (0) target = $region13
    $region12: #{tpu_custom_call.1} parent=1 // pred_region
      %s27 = ssub.s32 32, 32
      %28 = vsyncadd [#allocation4], %s27
      %s30 = sshll.u32 [#allocation5], 4
      %s31 = int_to_ptr.vmem [resolvable:$true] %s30
      %33 = dma.vmem_to_hbm [thread:$0]  %s31, 32, %s1, [#allocation4]
    $region13: #{tpu_custom_call.1} parent=1 // pred_fallthru
      _
    // Predicated region
    $region14: #{tpu_custom_call.1} parent=1 // pred_check
      _
    $region15: #{tpu_custom_call.1} parent=1 // pred_check_branch
      %35 = sbr.rel (0) target = $region17
    $region16: #{tpu_custom_call.1} parent=1 // pred_region
      %36 = dma.done [#allocation4], 32
    $region17: #{tpu_custom_call.1} parent=1 // pred_fallthru
      _
    %37 = vsyncpa [#allocation3], 1
    %38 = vsyncpa [#allocation4], 1

</llo_original>
